<compile_context>
chip_gen: v7x
topology: tpu7x:2x2x1
jax: 0.10.0
libtpu: 0.0.40
codegen_flags: <defaults>
</compile_context>

<pallas_src>
import functools

import jax
import jax.numpy as jnp
from jax.experimental import pallas as pl
from jax.experimental.pallas import tpu as pltpu


def _focal_loss_kernel(logits_ref, target_ref, out_ref, *, gamma, tn, n):
    # logits_ref: (TN, C), target_ref: (TN, 1) int32, out_ref: (1, 128) f32
    i = pl.program_id(0)

    x = logits_ref[...].astype(jnp.float32)                       # (TN, C)

    # Numerically stable softmax denominator: the ONLY C-wide transcendental.
    m = jnp.max(x, axis=-1, keepdims=True)                        # (TN, 1)
    shifted = x - m                                               # (TN, C)
    sumexp = jnp.sum(jnp.exp(shifted), axis=-1, keepdims=True)    # (TN, 1)

    # Gather shifted[r, target[r]] via one-hot masked sum (VPU/XLU, no EUP).
    tgt = target_ref[...]                                         # (TN, 1) int32
    col = jax.lax.broadcasted_iota(jnp.int32, shifted.shape, 1)   # (TN, C)
    shifted_t = jnp.sum(jnp.where(col == tgt, shifted, 0.0),
                        axis=-1, keepdims=True)                   # (TN, 1)

    # Remaining transcendentals are per-row only: one log + one exp on (TN, 1).
    lp_t = shifted_t - jnp.log(sumexp)                            # log p_{i,t_i}
    p_t = jnp.exp(lp_t)                                           # p_{i,t_i}
    one_minus = jnp.maximum(1.0 - p_t, 0.0)                       # guard rounding

    if gamma == 2.0:
        w = one_minus * one_minus
    elif gamma == 1.0:
        w = one_minus
    elif gamma == 0.0:
        w = jnp.ones_like(one_minus)
    else:
        w = jnp.power(one_minus, gamma)                           # (TN,1) only

    focal_t = w * lp_t                                            # (TN, 1)

    # Mask the ragged tail rows of the last tile (padded block rows -> 0).
    row = jax.lax.broadcasted_iota(jnp.int32, focal_t.shape, 0) + i * tn
    focal_t = jnp.where(row < n, focal_t, 0.0)

    # Per-block partial of the negative sum; lane-dense (1, 128) store.
    partial = -jnp.sum(focal_t)
    out_ref[...] = jnp.broadcast_to(partial, (1, 128)).astype(jnp.float32)


def focal_loss(logits, target, gamma=2.0, tile_rows=None):
    """logits: (N, C) float (f32 or bf16), target: (N,) int class indices.

    Returns scalar f32 loss (weight=None, reduction='mean').
    """
    # TODO(synk): ignore_index / class weights of nll_loss are not supported
    # (the reference module uses the defaults: weight=None, reduction='mean').
    n, c = logits.shape
    target2d = target.astype(jnp.int32).reshape(n, 1)

    if tile_rows is None:
        itemsize = jnp.dtype(logits.dtype).itemsize
        # Keep one input tile <= ~4 MiB so 2x double-buffer + f32 temporaries
        # fit the default 32 MiB scoped VMEM on every generation (incl. v7x).
        max_rows = max(8, (4 * 1024 * 1024) // max(1, c * itemsize))
        tn = min(n, 512, max_rows)
        tn = max(8, (tn // 8) * 8)
    else:
        tn = int(tile_rows)
    if n <= tn:
        tn = n                      # single full-extent block is always legal
    nb = pl.cdiv(n, tn)

    kernel = functools.partial(_focal_loss_kernel,
                               gamma=float(gamma), tn=tn, n=n)

    partials = pl.pallas_call(
        kernel,
        out_shape=jax.ShapeDtypeStruct((nb, 128), jnp.float32),
        grid=(nb,),
        in_specs=[
            pl.BlockSpec((tn, c), lambda i: (i, 0)),   # logits row-tile
            pl.BlockSpec((tn, 1), lambda i: (i, 0)),   # target row-tile
        ],
        out_specs=pl.BlockSpec((1, 128), lambda i: (i, 0)),
        compiler_params=pltpu.CompilerParams(
            dimension_semantics=("parallel",)),
    )(logits, target2d)

    # Tiny final reduction over per-block partials, then mean over the batch.
    return jnp.sum(partials[:, 0]) / n


def _focal_loss_ref(logits, target, gamma=2.0):
    # pure-JAX reference of the PyTorch forward
    log_prob = jax.nn.log_softmax(logits.astype(jnp.float32), axis=-1)
    prob = jnp.exp(log_prob)
    focal = (1.0 - prob) ** gamma * log_prob
    picked = jnp.take_along_axis(focal, target[:, None], axis=-1)[:, 0]
    return -jnp.mean(picked)


if __name__ == "__main__":
    key = jax.random.PRNGKey(0)
    k1, k2, k3, k4 = jax.random.split(key, 4)

    # Test 1: small single-tile case (batch=8, classes=32).
    N, C = 8, 32
    logits = jax.random.normal(k1, (N, C), dtype=jnp.float32)
    target = jax.random.randint(k2, (N,), 0, C, dtype=jnp.int32)

    loss = focal_loss(logits, target, gamma=2.0)
    jax.block_until_ready(loss)
    ref = _focal_loss_ref(logits, target, gamma=2.0)
    assert jnp.allclose(loss, ref, rtol=1e-5, atol=1e-6), (loss, ref)

    # Test 2: multi-tile grid with a ragged last tile (exercises masking,
    # per-block partial sums and the "parallel" grid axis).
    N2, C2 = 40, 128
    logits2 = jax.random.normal(k3, (N2, C2), dtype=jnp.float32)
    target2 = jax.random.randint(k4, (N2,), 0, C2, dtype=jnp.int32)

    loss2 = focal_loss(logits2, target2, gamma=2.0, tile_rows=16)
    jax.block_until_ready(loss2)
    ref2 = _focal_loss_ref(logits2, target2, gamma=2.0)
    assert jnp.allclose(loss2, ref2, rtol=1e-5, atol=1e-6), (loss2, ref2)

    print("KERNEL_OK")
</pallas_src>

<mosaic_0001>
module attributes {stable_mosaic.version = 11 : i64} {
  func.func @_focal_loss_kernel(%arg0: i32, %arg1: memref<8x32xf32, #tpu.memory_space<vmem>>, %arg2: memref<8x1xi32, #tpu.memory_space<vmem>>, %arg3: memref<1x128xf32, #tpu.memory_space<vmem>>) attributes {dimension_semantics = [#tpu.dimension_semantics<parallel>], iteration_bounds = array<i64: 1>, scalar_prefetch = 0 : i64, scratch_operands = 0 : i64, tpu.core_type = #tpu.core_type<tc>, window_params = [{transform_indices = @transform_0, window_bounds = array<i64: 8, 32>}, {transform_indices = @transform_1, window_bounds = array<i64: 8, 1>}, {transform_indices = @transform_2, window_bounds = array<i64: 1, 128>}]} {
    %c0 = arith.constant 0 : index
    %c0_0 = arith.constant 0 : index
    %0 = vector.load %arg1[%c0, %c0_0] : memref<8x32xf32, #tpu.memory_space<vmem>>, vector<8x32xf32>
    %cst = arith.constant dense<0xFF800000> : vector<8xf32>
    %1 = vector.multi_reduction <maximumf>, %0, %cst [1] : vector<8x32xf32> to vector<8xf32>
    %2 = vector.shape_cast %1 : vector<8xf32> to vector<8x1xf32>
    %3 = vector.broadcast %2 : vector<8x1xf32> to vector<8x32xf32>
    %4 = arith.subf %0, %3 : vector<8x32xf32>
    %5 = math.exp %4 : vector<8x32xf32>
    %cst_1 = arith.constant dense<0.000000e+00> : vector<8xf32>
    %6 = vector.multi_reduction <add>, %5, %cst_1 [1] : vector<8x32xf32> to vector<8xf32>
    %7 = vector.shape_cast %6 : vector<8xf32> to vector<8x1xf32>
    %c0_2 = arith.constant 0 : index
    %c0_3 = arith.constant 0 : index
    %8 = vector.load %arg2[%c0_2, %c0_3] : memref<8x1xi32, #tpu.memory_space<vmem>>, vector<8x1xi32>
    %9 = tpu.iota {dimensions = array<i32: 1>} : vector<8x32xi32>
    %10 = vector.broadcast %8 : vector<8x1xi32> to vector<8x32xi32>
    %11 = arith.cmpi eq, %9, %10 : vector<8x32xi32>
    %cst_4 = arith.constant 0.000000e+00 : f32
    %12 = vector.broadcast %cst_4 : f32 to vector<8x32xf32>
    %13 = arith.select %11, %4, %12 : vector<8x32xi1>, vector<8x32xf32>
    %cst_5 = arith.constant dense<0.000000e+00> : vector<8xf32>
    %14 = vector.multi_reduction <add>, %13, %cst_5 [1] : vector<8x32xf32> to vector<8xf32>
    %15 = vector.shape_cast %14 : vector<8xf32> to vector<8x1xf32>
    %16 = math.log %7 : vector<8x1xf32>
    %17 = arith.subf %15, %16 : vector<8x1xf32>
    %18 = math.exp %17 : vector<8x1xf32>
    %cst_6 = arith.constant 1.000000e+00 : f32
    %19 = vector.broadcast %cst_6 : f32 to vector<8x1xf32>
    %20 = arith.subf %19, %18 : vector<8x1xf32>
    %cst_7 = arith.constant 0.000000e+00 : f32
    %21 = vector.broadcast %cst_7 : f32 to vector<8x1xf32>
    %22 = arith.maximumf %20, %21 : vector<8x1xf32>
    %23 = arith.mulf %22, %22 : vector<8x1xf32>
    %24 = arith.mulf %23, %17 : vector<8x1xf32>
    %25 = tpu.iota {dimensions = array<i32: 0>} : vector<8x1xi32>
    %c8_i32 = arith.constant 8 : i32
    %26 = arith.muli %arg0, %c8_i32 : i32
    %27 = vector.broadcast %26 : i32 to vector<8x1xi32>
    %28 = arith.addi %25, %27 : vector<8x1xi32>
    %c8_i32_8 = arith.constant 8 : i32
    %29 = vector.broadcast %c8_i32_8 : i32 to vector<8x1xi32>
    %30 = arith.cmpi slt, %28, %29 : vector<8x1xi32>
    %cst_9 = arith.constant 0.000000e+00 : f32
    %31 = vector.broadcast %cst_9 : f32 to vector<8x1xf32>
    %32 = arith.select %30, %24, %31 : vector<8x1xi1>, vector<8x1xf32>
    %33 = vector.shape_cast %32 : vector<8x1xf32> to vector<1x8x1xf32>
    %cst_10 = arith.constant dense<0.000000e+00> : vector<1xf32>
    %34 = vector.multi_reduction <add>, %33, %cst_10 [1, 2] : vector<1x8x1xf32> to vector<1xf32>
    %35 = vector.shape_cast %34 : vector<1xf32> to vector<1x1x1xf32>
    %36 = vector.extract %35[0, 0, 0] : f32 from vector<1x1x1xf32>
    %cst_11 = arith.constant 0.000000e+00 : f32
    %37 = arith.subf %cst_11, %36 : f32
    %38 = vector.broadcast %37 : f32 to vector<1x128xf32>
    %c0_12 = arith.constant 0 : index
    %c0_13 = arith.constant 0 : index
    %39 = vector.load %arg3[%c0_12, %c0_13] : memref<1x128xf32, #tpu.memory_space<vmem>>, vector<1x128xf32>
    tpu.vector_store %arg3[%c0_12, %c0_13], %38 {strides = array<i32>} : memref<1x128xf32, #tpu.memory_space<vmem>>, vector<1x128xf32>,
    return
  }
  func.func @transform_0(%arg0: i32) -> (i32, i32) {
    %c0_i32 = arith.constant 0 : i32
    %c0_i32_0 = arith.constant 0 : i32
    return %arg0, %c0_i32 : i32, i32
  }
  func.func @transform_1(%arg0: i32) -> (i32, i32) {
    %c0_i32 = arith.constant 0 : i32
    %c0_i32_0 = arith.constant 0 : i32
    return %arg0, %c0_i32 : i32, i32
  }
  func.func @transform_2(%arg0: i32) -> (i32, i32) {
    %c0_i32 = arith.constant 0 : i32
    %c0_i32_0 = arith.constant 0 : i32
    return %arg0, %c0_i32 : i32, i32
  }
}

</mosaic_0001>

<llo_original>
// kernel: tpu_custom_call.1
$region0: #{tpu_custom_call.1}
  #allocation0 [shape = 'u32[]', space=smem, size = 0x4, offset = 0x4, fixed_abs, tag = 'smem constant byte address 0x4 - core index']
  #allocation1 [shape = 'u32[144,128]{1,0:T(1,128)}', space=vmem, size = 0x12000, scoped, tag = 'internal scratch']
  %s0 = inlined_call_operand.vmem [shape: f32[8,32], index: 0, kind: input, shape index: {}]
  %s1 = inlined_call_operand.vmem [shape: s32[8,1], index: 1, kind: input, shape index: {}]
  %s2 = inlined_call_operand.hbm [shape: f32[1,128], index: 2, kind: output, shape index: {}]
  %s3 = sld [smem:[#allocation0]]
  $region18: #{tpu_custom_call.1} parent=0
    _
  %s5 = ssub.s32 1, %s3
  %s6 = scalar_select 0, %s5, %s3
  $region1: #{tpu_custom_call.1} parent=0
    #allocation2 [shape = 'u8[512]{0}', space=vmem, size = 0x400, scoped, tag = 'output window, operand 0, single buffered']
    #allocation3 [shape = 's32[1]{0}', space=sflag, size = 0x4, scoped, tag = 'scoped memory for tpu_custom_call.1']
    %7 = vsyncpa [#allocation3], 0
    // Predicated region
    $region2: #{tpu_custom_call.1} parent=1 // pred_check
      _
    $region3: #{tpu_custom_call.1} parent=1 // pred_check_branch
      %9 = sbr.rel (0) target = $region5
    $region4: #{tpu_custom_call.1} parent=1 // pred_region
      _
    $region5: #{tpu_custom_call.1} parent=1 // pred_fallthru
      _
    // Predicated region
    $region6: #{tpu_custom_call.1} parent=1 // pred_check
      _
    $region7: #{tpu_custom_call.1} parent=1 // pred_check_branch
      %11 = sbr.rel (0) target = $region9
    $region8: #{tpu_custom_call.1} parent=1 // pred_region
      _
    $region9: #{tpu_custom_call.1} parent=1 // pred_fallthru
      _
    %v12 = vld [vmem:[%s0] sm:$0xff]
    %vm13 = vcmask 261120
    %v14 = vsel %vm13, %v12, -inf
    %15 = vmax.xlane.f32.xlu0 %v14
    %v16 = vpop.xlane.xlu0 %15
    %v17 = vsub.f32 %v12, %v16
    %v18 = vmul.f32 %v17, 1.442695
    %v19 = vpow.pop %v18
    %v20 = vsel %vm13, %v19, 0.0
    %21 = vadd.xlane.f32.xlu0 %v20
    %v22 = vpop.xlane.xlu0 %21
    %v23 = vld [vmem:[%s1] sm:$0xff]
    %v24 = vlaneseq
    %v25 = vand.u32 %v24, 127
    %26 = vset.pattern.permute.xlu0 0
    %27 = vperm.xlu0 %26, %v23
    %v28 = vpop.permute.xlu0 %27
    %vm29 = vcmp.eq.s32.totalorder %v25, %v28
    %v30 = vsel %vm29, %v17, 0.0
    %v31 = vsel %vm13, %v30, 0.0
    %32 = vadd.xlane.f32.xlu0 %v31
    %v33 = vpop.xlane.xlu0 %32
    %v34 = vlog2.pop %v22
    %v35 = vmul.f32 %v34, 0.6931472
    %v36 = vsub.f32 %v33, %v35
    %v37 = vmul.f32 %v36, 1.442695
    %v38 = vpow.pop %v37
    %v39 = vsub.f32 1.0, %v38
    %v40 = vmax.f32 %v39, 0.0
    %v41 = vmul.f32 %v40, %v40
    %v42 = vmul.f32 %v41, %v36
    %v43 = vlaneseq
    %v44 = vshrl.u32 %v43, 7
    %s45 = smul.u32 0, 8
    %v46 = vstv %s45
    %v47 = vadd.s32 %v44, %v46
    %vm48 = vcmp.lt.s32.totalorder %v47, 8
    %v49 = vsel %vm48, %v42, 0.0
    %vm50 = vcmask 7168
    %v51 = vsel %vm50, %v49, 0.0
    %52 = vadd.xlane.f32.xlu0 %v51
    %v53 = vpop.xlane.xlu0 %52
    %v54 = vrot.slane %v53, 4
    %v55 = vadd.f32 %v53, %v54
    %v56 = vrot.slane %v55, 2
    %v57 = vadd.f32 %v55, %v56
    %v58 = vrot.slane %v57, 1
    %v59 = vadd.f32 %v57, %v58
    %s60 = vtos %v59
    %s61 = ssub.f32 0.0, %s60
    %v62 = vstv %s61
    %63 = vst [vmem:[#allocation2] sm:$0x1] %v62
    // Predicated region
    $region10: #{tpu_custom_call.1} parent=1 // pred_check
      _
    $region11: #{tpu_custom_call.1} parent=1 // pred_check_branch
      %65 = sbr.rel (0) target = $region13
    $region12: #{tpu_custom_call.1} parent=1 // pred_region
      %s67 = ssub.s32 16, 16
      %68 = vsyncadd [#allocation3], %s67
      %s70 = sshll.u32 [#allocation2], 4
      %s71 = int_to_ptr.vmem [resolvable:$true] %s70
      %73 = dma.vmem_to_hbm [thread:$0]  %s71, 16, %s2, [#allocation3]
    $region13: #{tpu_custom_call.1} parent=1 // pred_fallthru
      _
    // Predicated region
    $region14: #{tpu_custom_call.1} parent=1 // pred_check
      _
    $region15: #{tpu_custom_call.1} parent=1 // pred_check_branch
      %75 = sbr.rel (0) target = $region17
    $region16: #{tpu_custom_call.1} parent=1 // pred_region
      %76 = dma.done [#allocation3], 16
    $region17: #{tpu_custom_call.1} parent=1 // pred_fallthru
      _
    %77 = vsyncpa [#allocation3], 1

</llo_original>
